<compile_context>
chip_gen: v7x
topology: tpu7x:2x2x1
jax: 0.10.0
libtpu: 0.0.40
codegen_flags: <defaults>
</compile_context>

<pallas_src>
import functools

import jax
import jax.numpy as jnp
from jax.experimental import pallas as pl
from jax.experimental.pallas import tpu as pltpu


def _round_up(x, m):
    return ((x + m - 1) // m) * m


def _cdiv(a, b):
    return (a + b - 1) // b


def _pick_tn(dp, cap=512):
    """Largest multiple of 128 that divides dp and is <= cap."""
    best = 128
    for cand in range(128, min(dp, cap) + 1, 128):
        if dp % cand == 0:
            best = cand
    return best


def _glu_linear_kernel(x_ref, wv_ref, wg_ref, bv_ref, bg_ref, o_ref, *,
                       approx_sigmoid):
    # x_ref  : (tm, K)   input row tile (cast to weight dtype for bf16 MXU)
    # wv_ref : (K, tn)   value-half weight tile
    # wg_ref : (K, tn)   gate-half weight tile
    # bv_ref : (1, tn)   f32 value bias tile
    # bg_ref : (1, tn)   f32 gate bias tile
    # o_ref  : (tm, tn)
    x = x_ref[...].astype(wv_ref.dtype)   # explicit cast: f32*bf16 would promote to f32 matmul
    a = jnp.dot(x, wv_ref[...], preferred_element_type=jnp.float32) + bv_ref[...]
    g = jnp.dot(x, wg_ref[...], preferred_element_type=jnp.float32) + bg_ref[...]
    z = 1.0 + jnp.exp(-g)                  # exp on EUP
    if approx_sigmoid:
        gate = pl.reciprocal(z, approx=True)   # EUP vrcp: frees VALU slots
    else:
        gate = 1.0 / z                          # exact sigmoid (f32 validation path)
    o_ref[...] = (a * gate).astype(o_ref.dtype)


def prepare_glu_linear_params(weight, bias, output_dim, *, tn=None,
                              param_dtype=jnp.bfloat16):
    """One-time parameter prep (do this OUTSIDE the hot path).

    weight: [2*D, K] (PyTorch nn.Linear layout), bias: [2*D].
    Returns ((w_val [K, Dp], w_gate [K, Dp], b_val [1, Dp], b_gate [1, Dp]), tn)
    where Dp is D padded to a multiple of tn (tn a multiple of 128).
    Default param_dtype=bfloat16 runs the MXU at bf16 rate and halves weight
    HBM/VMEM traffic; pass jnp.float32 for a full-precision path.
    """
    D = output_dim
    two_d, K = weight.shape
    assert two_d == 2 * D
    assert bias.shape == (2 * D,)

    dp0 = _round_up(D, 128)
    if tn is None:
        tn = _pick_tn(dp0)
    Dp = _round_up(dp0, tn)

    wdt = param_dtype if param_dtype is not None else weight.dtype
    w_val = jnp.zeros((K, Dp), wdt).at[:, :D].set(weight[:D, :].T.astype(wdt))
    w_gate = jnp.zeros((K, Dp), wdt).at[:, :D].set(weight[D:2 * D, :].T.astype(wdt))
    b_val = jnp.zeros((1, Dp), jnp.float32).at[0, :D].set(bias[:D].astype(jnp.float32))
    b_gate = jnp.zeros((1, Dp), jnp.float32).at[0, :D].set(bias[D:2 * D].astype(jnp.float32))
    return (w_val, w_gate, b_val, b_gate), tn


def glu_linear(x, params, output_dim, *, tn, tm_cap=512, approx_sigmoid=True,
               vmem_budget_bytes=None, interpret=False):
    """x: [B, T, K]; params from prepare_glu_linear_params."""
    w_val, w_gate, b_val, b_gate = params
    B, T, K = x.shape
    D = output_dim
    k_w, Dp = w_val.shape
    assert k_w == K and w_gate.shape == (K, Dp)
    assert Dp % tn == 0 and Dp >= D and tn % 128 == 0

    M = B * T
    x2d = x.reshape(M, K)

    # Per-chip VMEM budget (v7x has 64 MiB physical; v5e/v6e 128 MiB).
    if vmem_budget_bytes is None:
        try:
            cap = pltpu.get_tpu_info().vmem_capacity_bytes
        except Exception:
            cap = 64 * 1024 * 1024
        vmem_budget_bytes = int(cap * 0.7)

    # 1) Pad-aware row tile: split M into the fewest tiles of size <= tm_cap so
    #    padding waste stays small (per-step overhead is only ~0.35 us).
    n_row_blocks = max(1, _cdiv(M, tm_cap))
    tm = _round_up(_cdiv(M, n_row_blocks), 8)

    # 2) VMEM-aware: shrink tm until the double-buffered working set
    #    (+ f32 epilogue temporaries) fits the budget.
    xb, wb, ob = x2d.dtype.itemsize, w_val.dtype.itemsize, x.dtype.itemsize

    def _footprint(tm_):
        buf_x = 2 * tm_ * K * xb              # double-buffered x tile
        buf_w = 2 * 2 * K * tn * wb           # double-buffered val+gate weight tiles
        buf_b = 2 * 2 * tn * 4                # bias tiles
        buf_o = 2 * tm_ * tn * ob             # double-buffered output tile
        tmp = 4 * tm_ * tn * 4 + tm_ * K * wb  # a/g/z/gate temporaries + x cast copy
        return buf_x + buf_w + buf_b + buf_o + tmp

    while tm > 8 and _footprint(tm) > vmem_budget_bytes:
        tm = max(8, _round_up(tm // 2, 8))

    # 3) Megacore-aware: guarantee >=2 parallel blocks when possible so a
    #    v7x chip can shard the grid across both TensorCores.
    if _cdiv(M, tm) * (Dp // tn) < 2 and M > 8:
        tm = _round_up(_cdiv(M, 2), 8)

    Mp = _round_up(M, tm)
    if Mp != M:
        x2d = jnp.pad(x2d, ((0, Mp - M), (0, 0)))

    # Grid: N tiles OUTER, M tiles INNER -> weight/bias block index is constant
    # across the inner axis, so each weight tile is fetched once (not re-streamed
    # per M tile); x is re-read only Dp/tn times (typically 1).
    grid = (Dp // tn, Mp // tm)
    kernel = functools.partial(_glu_linear_kernel, approx_sigmoid=approx_sigmoid)

    out = pl.pallas_call(
        kernel,
        out_shape=jax.ShapeDtypeStruct((Mp, Dp), x.dtype),
        grid_spec=pltpu.PrefetchScalarGridSpec(
            num_scalar_prefetch=0,
            grid=grid,
            in_specs=[
                pl.BlockSpec((tm, K), lambda j, i: (i, 0)),      # x row tile
                pl.BlockSpec((K, tn), lambda j, i: (0, j)),      # value weight tile
                pl.BlockSpec((K, tn), lambda j, i: (0, j)),      # gate  weight tile
                pl.BlockSpec((1, tn), lambda j, i: (0, j)),      # value bias tile
                pl.BlockSpec((1, tn), lambda j, i: (0, j)),      # gate  bias tile
            ],
            out_specs=pl.BlockSpec((tm, tn), lambda j, i: (i, j)),
        ),
        compiler_params=pltpu.CompilerParams(
            dimension_semantics=("parallel", "parallel"),
            vmem_limit_bytes=int(min(max(vmem_budget_bytes, 32 * 2**20), 128 * 2**20)),
        ),
        interpret=interpret,
    )(x2d, w_val, w_gate, b_val, b_gate)

    return out[:M, :D].reshape(B, T, D)


def glu_linear_ref(x, weight, bias, output_dim):
    """Pure-JAX reference mirroring the PyTorch forward."""
    y = jnp.einsum("btk,ok->bto", x, weight) + bias
    a = y[..., :output_dim]
    g = y[..., output_dim:2 * output_dim]
    return a * jax.nn.sigmoid(g)


if __name__ == "__main__":
    # Small shapes consistent with the module: seq-style input [B, T, input_dim].
    B, T = 2, 8
    input_dim, output_dim = 32, 32

    key = jax.random.PRNGKey(0)
    kx, kw, kb = jax.random.split(key, 3)

    x = jax.random.normal(kx, (B, T, input_dim), dtype=jnp.float32)
    # Deterministic synthetic parameters (nn.Linear(input_dim, 2*output_dim)).
    bound = 1.0 / (input_dim ** 0.5)
    weight = jax.random.uniform(kw, (2 * output_dim, input_dim),
                                minval=-bound, maxval=bound, dtype=jnp.float32)
    bias = jax.random.uniform(kb, (2 * output_dim,),
                              minval=-bound, maxval=bound, dtype=jnp.float32)

    ref = glu_linear_ref(x, weight, bias, output_dim)

    # Production path: bf16 weights + bf16 MXU + EUP approx sigmoid.
    params_bf16, tn = prepare_glu_linear_params(weight, bias, output_dim)
    params_bf16 = jax.block_until_ready(params_bf16)
    out_bf16 = jax.block_until_ready(glu_linear(x, params_bf16, output_dim, tn=tn))
    assert out_bf16.shape == (B, T, output_dim)
    assert jnp.allclose(out_bf16, ref, atol=5e-2, rtol=5e-2), "bf16 path mismatch"

    # f32 validation path: exact sigmoid, tight tolerance.
    params_f32, tn32 = prepare_glu_linear_params(weight, bias, output_dim,
                                                 param_dtype=jnp.float32)
    params_f32 = jax.block_until_ready(params_f32)
    out_f32 = jax.block_until_ready(
        glu_linear(x, params_f32, output_dim, tn=tn32, approx_sigmoid=False))
    assert jnp.allclose(out_f32, ref, atol=1e-5, rtol=1e-5), "f32 path mismatch"

    print("KERNEL_OK")
</pallas_src>

<mosaic_0001>
module attributes {stable_mosaic.version = 11 : i64} {
  func.func @_glu_linear_kernel(%arg0: i32, %arg1: i32, %arg2: memref<8x32xf32, #tpu.memory_space<vmem>>, %arg3: memref<32x128xbf16, #tpu.memory_space<vmem>>, %arg4: memref<32x128xbf16, #tpu.memory_space<vmem>>, %arg5: memref<1x128xf32, #tpu.memory_space<vmem>>, %arg6: memref<1x128xf32, #tpu.memory_space<vmem>>, %arg7: memref<8x128xf32, #tpu.memory_space<vmem>>) attributes {dimension_semantics = [#tpu.dimension_semantics<parallel>, #tpu.dimension_semantics<parallel>], iteration_bounds = array<i64: 1, 2>, scalar_prefetch = 0 : i64, scratch_operands = 0 : i64, tpu.core_type = #tpu.core_type<tc>, window_params = [{transform_indices = @transform_0, window_bounds = array<i64: 8, 32>}, {transform_indices = @transform_1, window_bounds = array<i64: 32, 128>}, {transform_indices = @transform_2, window_bounds = array<i64: 32, 128>}, {transform_indices = @transform_3, window_bounds = array<i64: 1, 128>}, {transform_indices = @transform_4, window_bounds = array<i64: 1, 128>}, {transform_indices = @transform_5, window_bounds = array<i64: 8, 128>}]} {
    %c0 = arith.constant 0 : index
    %c0_0 = arith.constant 0 : index
    %0 = vector.load %arg2[%c0, %c0_0] : memref<8x32xf32, #tpu.memory_space<vmem>>, vector<8x32xf32>
    %1 = arith.truncf %0 : vector<8x32xf32> to vector<8x32xbf16>
    %c0_1 = arith.constant 0 : index
    %c0_2 = arith.constant 0 : index
    %2 = vector.load %arg3[%c0_1, %c0_2] : memref<32x128xbf16, #tpu.memory_space<vmem>>, vector<32x128xbf16>
    %cst = arith.constant dense<0.000000e+00> : vector<8x128xf32>
    %3 = tpu.matmul %1, %2, %cst {dimension_numbers = #tpu.dot_dimension_numbers<[1], [0], [0], [1], [0, 0, 1, 1], [], []>} : vector<8x32xbf16>, vector<32x128xbf16>, vector<8x128xf32> -> vector<8x128xf32>
    %c0_3 = arith.constant 0 : index
    %c0_4 = arith.constant 0 : index
    %4 = vector.load %arg5[%c0_3, %c0_4] : memref<1x128xf32, #tpu.memory_space<vmem>>, vector<1x128xf32>
    %5 = vector.broadcast %4 : vector<1x128xf32> to vector<8x128xf32>
    %6 = arith.addf %3, %5 : vector<8x128xf32>
    %c0_5 = arith.constant 0 : index
    %c0_6 = arith.constant 0 : index
    %7 = vector.load %arg4[%c0_5, %c0_6] : memref<32x128xbf16, #tpu.memory_space<vmem>>, vector<32x128xbf16>
    %cst_7 = arith.constant dense<0.000000e+00> : vector<8x128xf32>
    %8 = tpu.matmul %1, %7, %cst_7 {dimension_numbers = #tpu.dot_dimension_numbers<[1], [0], [0], [1], [0, 0, 1, 1], [], []>} : vector<8x32xbf16>, vector<32x128xbf16>, vector<8x128xf32> -> vector<8x128xf32>
    %c0_8 = arith.constant 0 : index
    %c0_9 = arith.constant 0 : index
    %9 = vector.load %arg6[%c0_8, %c0_9] : memref<1x128xf32, #tpu.memory_space<vmem>>, vector<1x128xf32>
    %10 = vector.broadcast %9 : vector<1x128xf32> to vector<8x128xf32>
    %11 = arith.addf %8, %10 : vector<8x128xf32>
    %cst_10 = arith.constant 0.000000e+00 : f32
    %12 = vector.broadcast %cst_10 : f32 to vector<8x128xf32>
    %13 = arith.subf %12, %11 : vector<8x128xf32>
    %14 = math.exp %13 : vector<8x128xf32>
    %cst_11 = arith.constant 1.000000e+00 : f32
    %15 = vector.broadcast %cst_11 : f32 to vector<8x128xf32>
    %16 = arith.addf %15, %14 : vector<8x128xf32>
    %17 = tpu.reciprocal %16 {approx = true} : vector<8x128xf32> -> vector<8x128xf32>
    %18 = arith.mulf %6, %17 : vector<8x128xf32>
    %c0_12 = arith.constant 0 : index
    %c0_13 = arith.constant 0 : index
    %19 = vector.load %arg7[%c0_12, %c0_13] : memref<8x128xf32, #tpu.memory_space<vmem>>, vector<8x128xf32>
    tpu.vector_store %arg7[%c0_12, %c0_13], %18 {strides = array<i32>} : memref<8x128xf32, #tpu.memory_space<vmem>>, vector<8x128xf32>,
    return
  }
  func.func @transform_0(%arg0: i32, %arg1: i32) -> (i32, i32) {
    %c0_i32 = arith.constant 0 : i32
    %c0_i32_0 = arith.constant 0 : i32
    return %arg1, %c0_i32 : i32, i32
  }
  func.func @transform_1(%arg0: i32, %arg1: i32) -> (i32, i32) {
    %c0_i32 = arith.constant 0 : i32
    %c0_i32_0 = arith.constant 0 : i32
    return %c0_i32, %arg0 : i32, i32
  }
  func.func @transform_2(%arg0: i32, %arg1: i32) -> (i32, i32) {
    %c0_i32 = arith.constant 0 : i32
    %c0_i32_0 = arith.constant 0 : i32
    return %c0_i32, %arg0 : i32, i32
  }
  func.func @transform_3(%arg0: i32, %arg1: i32) -> (i32, i32) {
    %c0_i32 = arith.constant 0 : i32
    %c0_i32_0 = arith.constant 0 : i32
    return %c0_i32, %arg0 : i32, i32
  }
  func.func @transform_4(%arg0: i32, %arg1: i32) -> (i32, i32) {
    %c0_i32 = arith.constant 0 : i32
    %c0_i32_0 = arith.constant 0 : i32
    return %c0_i32, %arg0 : i32, i32
  }
  func.func @transform_5(%arg0: i32, %arg1: i32) -> (i32, i32) {
    %c0_i32 = arith.constant 0 : i32
    return %arg1, %arg0 : i32, i32
  }
}

</mosaic_0001>

<llo_original>
// kernel: tpu_custom_call.1
$region0: #{tpu_custom_call.1}
  #allocation0 [shape = 'u32[]', space=smem, size = 0x4, offset = 0x4, fixed_abs, tag = 'smem constant byte address 0x4 - core index']
  #allocation1 [shape = 'u32[144,128]{1,0:T(1,128)}', space=vmem, size = 0x12000, scoped, tag = 'internal scratch']
  %s0 = inlined_call_operand.hbm [shape: f32[16,32], index: 0, kind: input, shape index: {}]
  %s1 = inlined_call_operand.hbm [shape: bf16[32,128], index: 1, kind: input, shape index: {}]
  %s2 = inlined_call_operand.hbm [shape: bf16[32,128], index: 2, kind: input, shape index: {}]
  %s3 = inlined_call_operand.vmem [shape: f32[1,128], index: 3, kind: input, shape index: {}]
  %s4 = inlined_call_operand.vmem [shape: f32[1,128], index: 4, kind: input, shape index: {}]
  %s5 = inlined_call_operand.hbm [shape: f32[16,128], index: 5, kind: output, shape index: {}]
  %s6 = sld [smem:[#allocation0]]
  $region65: #{tpu_custom_call.1} parent=0
    _
  %s8 = ssub.s32 1, %s6
  %s9 = scalar_select 0, %s8, %s6
  $region1: #{tpu_custom_call.1} parent=0
    #allocation2 [shape = 'u8[8192]{0}', space=vmem, size = 0x2000, scoped, tag = 'input window, operand 0']
    #allocation3 [shape = 's32[2]{0}', space=sflag, size = 0x8, scoped, tag = 'scoped memory for tpu_custom_call.1']
    #allocation4 [shape = 's32[2]{0}', space=sflag, size = 0x8, scoped, tag = 'scoped memory for tpu_custom_call.1']
    #allocation5 [shape = 'u8[8192]{0}', space=vmem, size = 0x2000, scoped, tag = 'input window, operand 1, single buffered']
    #allocation6 [shape = 's32[1]{0}', space=sflag, size = 0x4, scoped, tag = 'scoped memory for tpu_custom_call.1']
    #allocation7 [shape = 'u8[8192]{0}', space=vmem, size = 0x2000, scoped, tag = 'input window, operand 2, single buffered']
    #allocation8 [shape = 'u8[8192]{0}', space=vmem, size = 0x2000, scoped, tag = 'output window, operand 0']
    %10 = vsyncpa [#allocation3], 0
    %s11 = scalar_lea.sflag [#allocation3], 1
    %12 = vsyncpa %s11, 0
    %13 = vsyncpa [#allocation6], 0
    %14 = vsyncpa [#allocation4], 0
    %s15 = scalar_lea.sflag [#allocation4], 1
    %16 = vsyncpa %s15, 0
    loop: start=0, step=1, limit=4
    $region2: #{tpu_custom_call.1} parent=1 // loop_pre_header
      _
    $region3: #{tpu_custom_call.1} parent=1 // loop_header
      %s18 = sphi 0, %s22
      %p19 = scmp.ge.s32.totalorder %s18, 4
      %s25 = sphi 0, %s37
      %s26 = sphi 0, %s33
      %s27 = sphi 0, %s25
      %s28 = sphi 0, %s26
      %s29 = sphi 0, %s27
      %s30 = sphi 0, %s28
      %s40 = sphi 0, %s42
      %s43 = sphi 0, %s40
      %s44 = sphi 0, %s43
      %s60 = sphi 0, %s44
      %s66 = sphi 0, %s68
      %s69 = sphi 0, %s66
      %s70 = sphi 0, %s69
      %s86 = sphi 0, %s70
      %s92 = sphi 0, %s94
      %s95 = sphi 0, %s92
      %s96 = sphi 0, %s95
      %s112 = sphi 0, %s96
      %s118 = sphi 0, %s120
      %s121 = sphi 0, %s118
      %s122 = sphi 0, %s121
      %s138 = sphi 0, %s122
      %s144 = sphi 0, %s146
      %s147 = sphi 0, %s144
      %s148 = sphi 0, %s147
      %s164 = sphi 0, %s148
      %s172 = sphi 0, %s174
      %s175 = sphi 0, %s172
      %s176 = sphi 0, %s175
      %s192 = sphi 0, %s176
    $region4: #{tpu_custom_call.1} parent=1 // loop_header_branch
      %21 = sbr.rel (%p19) target = $region8
    $region5: #{tpu_custom_call.1} parent=1 // loop_body
      %s23 = ssub.s32 %s18, 1
      %s24 = ssub.s32 %s18, 2
      %s31 = sadd.s32 1, %s26
      %p32 = scmp.ge.s32.totalorder %s31, 2
      %s33 = scalar_select %p32, 0, %s31
      %s34 = sadd.s32 1, %s25
      %s35 = scalar_select %p32, %s34, %s25
      %p36 = scmp.ge.s32.totalorder %s35, 1
      %s37 = scalar_select %p36, 0, %s35
      %s38 = ssub.s32 %s26, %s33
      %p39 = scmp.eq.s32.totalorder %s38, 0
      %s41 = sadd.s32 %s40, 1
      %s42 = scalar_select %p39, %s40, %s41
      %p45 = pneg %p39
      %p46 = scmp.eq.s32.totalorder %s18, 1
      %p47 = por %p45, %p46
      %p48 = scmp.ne.s32.totalorder %s40, %s43
      %p49 = scmp.eq.s32.totalorder %s18, 0
      %p50 = por %p48, %p49
      %p51 = scmp.ne.s32.totalorder %s40, %s43
      %p52 = scmp.eq.s32.totalorder %s23, 1
      %p53 = por %p51, %p52
      %p54 = scmp.ne.s32.totalorder %s43, %s44
      %p55 = scmp.eq.s32.totalorder %s23, 0
      %p56 = por %p54, %p55
      %p57 = scmp.ne.s32.totalorder %s43, %s44
      %p58 = scmp.eq.s32.totalorder %s24, 1
      %p59 = por %p57, %p58
      %p61 = scmp.ne.s32.totalorder %s44, %s60
      %p62 = scmp.eq.s32.totalorder %s24, 0
      %p63 = por %p61, %p62
      %s64 = ssub.s32 %s25, %s37
      %p65 = scmp.eq.s32.totalorder %s64, 0
      %s67 = sadd.s32 %s66, 1
      %s68 = scalar_select %p65, %s66, %s67
      %p71 = pneg %p65
      %p72 = scmp.eq.s32.totalorder %s18, 1
      %p73 = por %p71, %p72
      %p74 = scmp.ne.s32.totalorder %s66, %s69
      %p75 = scmp.eq.s32.totalorder %s18, 0
      %p76 = por %p74, %p75
      %p77 = scmp.ne.s32.totalorder %s66, %s69
      %p78 = scmp.eq.s32.totalorder %s23, 1
      %p79 = por %p77, %p78
      %p80 = scmp.ne.s32.totalorder %s69, %s70
      %p81 = scmp.eq.s32.totalorder %s23, 0
      %p82 = por %p80, %p81
      %p83 = scmp.ne.s32.totalorder %s69, %s70
      %p84 = scmp.eq.s32.totalorder %s24, 1
      %p85 = por %p83, %p84
      %p87 = scmp.ne.s32.totalorder %s70, %s86
      %p88 = scmp.eq.s32.totalorder %s24, 0
      %p89 = por %p87, %p88
      %s90 = ssub.s32 %s25, %s37
      %p91 = scmp.eq.s32.totalorder %s90, 0
      %s93 = sadd.s32 %s92, 1
      %s94 = scalar_select %p91, %s92, %s93
      %p97 = pneg %p91
      %p98 = scmp.eq.s32.totalorder %s18, 1
      %p99 = por %p97, %p98
      %p100 = scmp.ne.s32.totalorder %s92, %s95
      %p101 = scmp.eq.s32.totalorder %s18, 0
      %p102 = por %p100, %p101
      %p103 = scmp.ne.s32.totalorder %s92, %s95
      %p104 = scmp.eq.s32.totalorder %s23, 1
      %p105 = por %p103, %p104
      %p106 = scmp.ne.s32.totalorder %s95, %s96
      %p107 = scmp.eq.s32.totalorder %s23, 0
      %p108 = por %p106, %p107
      %p109 = scmp.ne.s32.totalorder %s95, %s96
      %p110 = scmp.eq.s32.totalorder %s24, 1
      %p111 = por %p109, %p110
      %p113 = scmp.ne.s32.totalorder %s96, %s112
      %p114 = scmp.eq.s32.totalorder %s24, 0
      %p115 = por %p113, %p114
      %s116 = ssub.s32 %s25, %s37
      %p117 = scmp.eq.s32.totalorder %s116, 0
      %s119 = sadd.s32 %s118, 1
      %s120 = scalar_select %p117, %s118, %s119
      %p123 = pneg %p117
      %p124 = scmp.eq.s32.totalorder %s18, 1
      %p125 = por %p123, %p124
      %p126 = scmp.ne.s32.totalorder %s118, %s121
      %p127 = scmp.eq.s32.totalorder %s18, 0
      %p128 = por %p126, %p127
      %p129 = scmp.ne.s32.totalorder %s118, %s121
      %p130 = scmp.eq.s32.totalorder %s23, 1
      %p131 = por %p129, %p130
      %p132 = scmp.ne.s32.totalorder %s121, %s122
      %p133 = scmp.eq.s32.totalorder %s23, 0
      %p134 = por %p132, %p133
      %p135 = scmp.ne.s32.totalorder %s121, %s122
      %p136 = scmp.eq.s32.totalorder %s24, 1
      %p137 = por %p135, %p136
      %p139 = scmp.ne.s32.totalorder %s122, %s138
      %p140 = scmp.eq.s32.totalorder %s24, 0
      %p141 = por %p139, %p140
      %s142 = ssub.s32 %s25, %s37
      %p143 = scmp.eq.s32.totalorder %s142, 0
      %s145 = sadd.s32 %s144, 1
      %s146 = scalar_select %p143, %s144, %s145
      %p149 = pneg %p143
      %p150 = scmp.eq.s32.totalorder %s18, 1
      %p151 = por %p149, %p150
      %p152 = scmp.ne.s32.totalorder %s144, %s147
      %p153 = scmp.eq.s32.totalorder %s18, 0
      %p154 = por %p152, %p153
      %p155 = scmp.ne.s32.totalorder %s144, %s147
      %p156 = scmp.eq.s32.totalorder %s23, 1
      %p157 = por %p155, %p156
      %p158 = scmp.ne.s32.totalorder %s147, %s148
      %p159 = scmp.eq.s32.totalorder %s23, 0
      %p160 = por %p158, %p159
      %p161 = scmp.ne.s32.totalorder %s147, %s148
      %p162 = scmp.eq.s32.totalorder %s24, 1
      %p163 = por %p161, %p162
      %p165 = scmp.ne.s32.totalorder %s148, %s164
      %p166 = scmp.eq.s32.totalorder %s24, 0
      %p167 = por %p165, %p166
      %s168 = ssub.s32 %s26, %s33
      %s169 = ssub.s32 %s25, %s37
      %s170 = sor.u32 %s168, %s169
      %p171 = scmp.eq.s32.totalorder %s170, 0
      %s173 = sadd.s32 %s172, 1
      %s174 = scalar_select %p171, %s172, %s173
      %p177 = pneg %p171
      %p178 = scmp.eq.s32.totalorder %s18, 1
      %p179 = por %p177, %p178
      %p180 = scmp.ne.s32.totalorder %s172, %s175
      %p181 = scmp.eq.s32.totalorder %s18, 0
      %p182 = por %p180, %p181
      %p183 = scmp.ne.s32.totalorder %s172, %s175
      %p184 = scmp.eq.s32.totalorder %s23, 1
      %p185 = por %p183, %p184
      %p186 = scmp.ne.s32.totalorder %s175, %s176
      %p187 = scmp.eq.s32.totalorder %s23, 0
      %p188 = por %p186, %p187
      %p189 = scmp.ne.s32.totalorder %s175, %s176
      %p190 = scmp.eq.s32.totalorder %s24, 1
      %p191 = por %p189, %p190
      %p193 = scmp.ne.s32.totalorder %s176, %s192
      %p194 = scmp.eq.s32.totalorder %s24, 0
      %p195 = por %p193, %p194
      %p196 = scmp.le.s32.totalorder 1, %s18
      %p197 = scmp.lt.s32.totalorder %s18, 3
      %p198 = pnand %p196, %p197
      %p199 = pneg %p198
      // Predicated region
      $region9: #{tpu_custom_call.1} parent=5 // pred_check
        _
      $region10: #{tpu_custom_call.1} parent=5 // pred_check_branch
        %201 = sbr.rel (%p198) target = $region12
      $region11: #{tpu_custom_call.1} parent=5 // pred_region
        %s202 = ssub.s32 %s18, 1
        // Predicated region
        $region13: #{tpu_custom_call.1} parent=11 // pred_check
          %p203 = pneg %p82
        $region14: #{tpu_custom_call.1} parent=11 // pred_check_branch
          %205 = sbr.rel (%p203) target = $region16
        $region15: #{tpu_custom_call.1} parent=11 // pred_region
          %s207 = ssub.s32 256, 256
          %208 = vsyncadd [#allocation6], %s207
          %s209 = smul.addr %s27, 64
          %s210 = scalar_lea.hbm %s1, %s209
          %s211 = sshll.u32 [#allocation5], 4
          %s212 = int_to_ptr.vmem [resolvable:$true] %s211
          %217 = dma.hbm_to_vmem [thread:$0]  %s210, 256, %s212, [#allocation6], 64, 64, 4
        $region16: #{tpu_custom_call.1} parent=11 // pred_fallthru
          _
        // Predicated region
        $region17: #{tpu_custom_call.1} parent=11 // pred_check
          %p218 = pneg %p108
        $region18: #{tpu_custom_call.1} parent=11 // pred_check_branch
          %220 = sbr.rel (%p218) target = $region20
        $region19: #{tpu_custom_call.1} parent=11 // pred_region
          %s222 = ssub.s32 256, 256
          %223 = vsyncadd [#allocation6], %s222
          %s224 = smul.addr %s27, 64
          %s225 = scalar_lea.hbm %s2, %s224
          %s226 = sshll.u32 [#allocation7], 4
          %s227 = int_to_ptr.vmem [resolvable:$true] %s226
          %232 = dma.hbm_to_vmem [thread:$0]  %s225, 256, %s227, [#allocation6], 64, 64, 4
        $region20: #{tpu_custom_call.1} parent=11 // pred_fallthru
          _
        // Predicated region
        $region21: #{tpu_custom_call.1} parent=11 // pred_check
          %p233 = pneg %p134
        $region22: #{tpu_custom_call.1} parent=11 // pred_check_branch
          %235 = sbr.rel (%p233) target = $region24
        $region23: #{tpu_custom_call.1} parent=11 // pred_region
          %p236 = scmp.lt.s32.totalorder %s27, 0
          %s237 = scalar_select %p236, %s27, 0
          %s238 = scalar_lea.vmem %s3, %s237
        $region24: #{tpu_custom_call.1} parent=11 // pred_fallthru
          _
        // Predicated region
        $region25: #{tpu_custom_call.1} parent=11 // pred_check
          %p239 = pneg %p160
        $region26: #{tpu_custom_call.1} parent=11 // pred_check_branch
          %241 = sbr.rel (%p239) target = $region28
        $region27: #{tpu_custom_call.1} parent=11 // pred_region
          %p242 = scmp.lt.s32.totalorder %s27, 0
          %s243 = scalar_select %p242, %s27, 0
          %s244 = scalar_lea.vmem %s4, %s243
        $region28: #{tpu_custom_call.1} parent=11 // pred_fallthru
          _
      $region12: #{tpu_custom_call.1} parent=5 // pred_fallthru
        _
      %p245 = scmp.lt.s32.totalorder %s18, 2
      // Predicated region
      $region29: #{tpu_custom_call.1} parent=5 // pred_check
        %p246 = pneg %p245
      $region30: #{tpu_custom_call.1} parent=5 // pred_check_branch
        %248 = sbr.rel (%p246) target = $region32
      $region31: #{tpu_custom_call.1} parent=5 // pred_region
        // Predicated region
        $region33: #{tpu_custom_call.1} parent=31 // pred_check
          %p249 = pneg %p50
        $region34: #{tpu_custom_call.1} parent=31 // pred_check_branch
          %251 = sbr.rel (%p249) target = $region36
        $region35: #{tpu_custom_call.1} parent=31 // pred_region
          %s252 = sand.u32 %s40, 1
          %s253 = scalar_lea.sflag [#allocation3], %s252
          %s254 = sand.u32 %s40, 1
          %s255 = smul.addr %s254, 8
          %s256 = scalar_lea.vmem [#allocation2], %s255
          %s258 = ssub.s32 128, 128
          %259 = vsyncadd %s253, %s258
          %s260 = smul.addr %s26, 128
          %s261 = scalar_lea.hbm %s0, %s260
          %s263 = sshll.u32 %s256, 4
          %s264 = int_to_ptr.vmem [resolvable:$true] %s263
          %266 = dma.hbm_to_vmem [thread:$0]  %s261, 128, %s264, %s253
        $region36: #{tpu_custom_call.1} parent=31 // pred_fallthru
          _
      $region32: #{tpu_custom_call.1} parent=5 // pred_fallthru
        _
      %p267 = scmp.le.s32.totalorder 1, %s18
      %p268 = scmp.lt.s32.totalorder %s18, 3
      %p269 = pnand %p267, %p268
      %p270 = pneg %p269
      // Predicated region
      $region37: #{tpu_custom_call.1} parent=5 // pred_check
        _
      $region38: #{tpu_custom_call.1} parent=5 // pred_check_branch
        %272 = sbr.rel (%p269) target = $region40
      $region39: #{tpu_custom_call.1} parent=5 // pred_region
        %s273 = ssub.s32 %s18, 1
        %s274 = sand.u32 %s43, 1
        %s275 = scalar_lea.sflag [#allocation3], %s274
        %s276 = sand.u32 %s43, 1
        %s277 = smul.addr %s276, 8
        %s278 = scalar_lea.vmem [#allocation2], %s277
        // Predicated region
        $region41: #{tpu_custom_call.1} parent=39 // pred_check
          %p279 = pneg %p56
        $region42: #{tpu_custom_call.1} parent=39 // pred_check_branch
          %281 = sbr.rel (%p279) target = $region44
        $region43: #{tpu_custom_call.1} parent=39 // pred_region
          %282 = dma.done %s275, 128
        $region44: #{tpu_custom_call.1} parent=39 // pred_fallthru
          _
        // Predicated region
        $region45: #{tpu_custom_call.1} parent=39 // pred_check
          %p283 = pneg %p82
        $region46: #{tpu_custom_call.1} parent=39 // pred_check_branch
          %285 = sbr.rel (%p283) target = $region48
        $region47: #{tpu_custom_call.1} parent=39 // pred_region
          %286 = dma.done [#allocation6], 256
        $region48: #{tpu_custom_call.1} parent=39 // pred_fallthru
          _
        // Predicated region
        $region49: #{tpu_custom_call.1} parent=39 // pred_check
          %p287 = pneg %p108
        $region50: #{tpu_custom_call.1} parent=39 // pred_check_branch
          %289 = sbr.rel (%p287) target = $region52
        $region51: #{tpu_custom_call.1} parent=39 // pred_region
          %290 = dma.done [#allocation6], 256
        $region52: #{tpu_custom_call.1} parent=39 // pred_fallthru
          _
        %s291 = sand.u32 %s43, 1
        %s292 = scalar_lea.sflag [#allocation3], %s291
        %s293 = sand.u32 %s43, 1
        %s294 = smul.addr %s293, 8
        %s295 = scalar_lea.vmem [#allocation2], %s294
        %p296 = pneg %p56
        %p297 = pneg %p53
        %p298 = pneg %p82
        %p299 = pneg %p79
        %p300 = pneg %p108
        %p301 = pneg %p105
        %p302 = scmp.lt.s32.totalorder %s27, 0
        %s303 = scalar_select %p302, %s27, 0
        %s304 = scalar_lea.vmem %s3, %s303
        %p305 = pneg %p134
        %p306 = pneg %p131
        %p307 = scmp.lt.s32.totalorder %s27, 0
        %s308 = scalar_select %p307, %s27, 0
        %s309 = scalar_lea.vmem %s4, %s308
        %p310 = pneg %p160
        %p311 = pneg %p157
        %p312 = pneg %p188
        %p313 = pneg %p185
        %s314 = sand.u32 %s175, 1
        %s315 = scalar_lea.sflag [#allocation4], %s314
        %s316 = sand.u32 %s175, 1
        %s317 = smul.addr %s316, 8
        %s318 = scalar_lea.vmem [#allocation8], %s317
        %p319 = scmp.lt.s32.totalorder %s27, 0
        %s320 = scalar_select %p319, %s27, 0
        %s321 = scalar_lea.vmem %s3, %s320
        %p322 = scmp.lt.s32.totalorder %s27, 0
        %s323 = scalar_select %p322, %s27, 0
        %s324 = scalar_lea.vmem %s4, %s323
        %v326 = vld [vmem:[%s278] sm:$0xff]
        %v327 = vpack.c.bf16 %v326, %v326
        %v328 = vld [vmem:[#allocation5] sm:$0xf]
        %v329 = vld [vmem:[#allocation5 + $0x4] sm:$0xf]
        %v330 = vld [vmem:[#allocation5 + $0x8] sm:$0xf]
        %v331 = vld [vmem:[#allocation5 + $0xc] sm:$0xf]
        %v332 = vld [vmem:[%s321] sm:$0x1]
        %v334 = vlaneseq
        %v335 = vshrl.u32 %v334, 7
        %v336 = vsub.s32 0, %v335
        %v337 = vrot.slane %v332, %v336
        %v343 = vunpack.c.l.b16 %v328
        %v344 = vunpack.c.l.b16 %v329
        %v345 = vunpack.c.l.b16 %v330
        %v346 = vunpack.c.l.b16 %v331
        %v347 = vpack.c.b16 %v344, %v343
        %v348 = vpack.c.b16 %v346, %v345
        %vm351 = vcmask 261120
        %v353 = vsel %vm351, %v327, 0
        %355 = vmatprep.subr.bf16.mxu0 0
        %356 = vmatpush1.bf16.msra.mxu0 %v347
        %357 = vmatprep.subr.bf16.mxu0 0
        %358 = vmatpush1.bf16.msra.mxu0 %v348
        %359 = vmatprep.subr.bf16.mxu0 0
        %360 = vmatpush1.bf16.msra.mxu0 0
        %361 = vmatprep.subr.bf16.mxu0 0
        %362 = vmatpush1.bf16.msra.mxu0 0
        %363 = vmatprep.subr.bf16.mxu0 0
        %364 = vmatpush1.bf16.msra.mxu0 0
        %365 = vmatprep.subr.bf16.mxu0 0
        %366 = vmatpush1.bf16.msra.mxu0 0
        %367 = vmatprep.subr.bf16.mxu0 0
        %368 = vmatpush1.bf16.msra.mxu0 0
        %369 = vmatprep.subr.bf16.mxu0 0
        %370 = vmatpush1.bf16.msra.mxu0 0
        %371 = vmatprep.subr.bf16.mxu0 0
        %372 = vmatpush1.bf16.msra.mxu0 0
        %373 = vmatprep.subr.bf16.mxu0 0
        %374 = vmatpush1.bf16.msra.mxu0 0
        %375 = vmatprep.subr.bf16.mxu0 0
        %376 = vmatpush1.bf16.msra.mxu0 0
        %377 = vmatprep.subr.bf16.mxu0 0
        %378 = vmatpush1.bf16.msra.mxu0 0
        %379 = vmatprep.subr.bf16.mxu0 0
        %380 = vmatpush1.bf16.msra.mxu0 0
        %381 = vmatprep.subr.bf16.mxu0 0
        %382 = vmatpush1.bf16.msra.mxu0 0
        %383 = vmatprep.subr.bf16.mxu0 0
        %384 = vmatpush1.bf16.msra.mxu0 0
        %385 = vmatprep.subr.bf16.mxu0 0
        %386 = vmatpush1.bf16.msra.mxu0 0
        %387 = vmatprep.mubr.bf16.mxu0 0
        %388 = vmatmul.mubr.bf16.gmra.mrb[0].mxu0 %v353
        %v389 = vpop.f32.mrb[0].mxu0
        %v390 = vadd.f32 %v337, %v389
        %v391 = vpop.f32.mrb[0].mxu0
        %v392 = vpop.f32.mrb[0].mxu0
        %v393 = vpop.f32.mrb[0].mxu0
        %394 = vdwg.mxu0
        %v395 = vld [vmem:[#allocation7] sm:$0xf]
        %v396 = vld [vmem:[#allocation7 + $0x4] sm:$0xf]
        %v397 = vld [vmem:[#allocation7 + $0x8] sm:$0xf]
        %v398 = vld [vmem:[#allocation7 + $0xc] sm:$0xf]
        %v399 = vld [vmem:[%s324] sm:$0x1]
        %v401 = vlaneseq
        %v402 = vshrl.u32 %v401, 7
        %v403 = vsub.s32 0, %v402
        %v404 = vrot.slane %v399, %v403
        %v410 = vunpack.c.l.b16 %v395
        %v411 = vunpack.c.l.b16 %v396
        %v412 = vunpack.c.l.b16 %v397
        %v413 = vunpack.c.l.b16 %v398
        %v414 = vpack.c.b16 %v411, %v410
        %v415 = vpack.c.b16 %v413, %v412
        %418 = vmatprep.subr.bf16.mxu0 0
        %419 = vmatpush1.bf16.msra.mxu0 %v414
        %420 = vmatprep.subr.bf16.mxu0 0
        %421 = vmatpush1.bf16.msra.mxu0 %v415
        %422 = vmatprep.subr.bf16.mxu0 0
        %423 = vmatpush1.bf16.msra.mxu0 0
        %424 = vmatprep.subr.bf16.mxu0 0
        %425 = vmatpush1.bf16.msra.mxu0 0
        %426 = vmatprep.subr.bf16.mxu0 0
        %427 = vmatpush1.bf16.msra.mxu0 0
        %428 = vmatprep.subr.bf16.mxu0 0
        %429 = vmatpush1.bf16.msra.mxu0 0
        %430 = vmatprep.subr.bf16.mxu0 0
        %431 = vmatpush1.bf16.msra.mxu0 0
        %432 = vmatprep.subr.bf16.mxu0 0
        %433 = vmatpush1.bf16.msra.mxu0 0
        %434 = vmatprep.subr.bf16.mxu0 0
        %435 = vmatpush1.bf16.msra.mxu0 0
        %436 = vmatprep.subr.bf16.mxu0 0
        %437 = vmatpush1.bf16.msra.mxu0 0
        %438 = vmatprep.subr.bf16.mxu0 0
        %439 = vmatpush1.bf16.msra.mxu0 0
        %440 = vmatprep.subr.bf16.mxu0 0
        %441 = vmatpush1.bf16.msra.mxu0 0
        %442 = vmatprep.subr.bf16.mxu0 0
        %443 = vmatpush1.bf16.msra.mxu0 0
        %444 = vmatprep.subr.bf16.mxu0 0
        %445 = vmatpush1.bf16.msra.mxu0 0
        %446 = vmatprep.subr.bf16.mxu0 0
        %447 = vmatpush1.bf16.msra.mxu0 0
        %448 = vmatprep.subr.bf16.mxu0 0
        %449 = vmatpush1.bf16.msra.mxu0 0
        %450 = vmatprep.mubr.bf16.mxu0 0
        %451 = vmatmul.mubr.bf16.gmra.mrb[0].mxu0 %v353
        %v452 = vpop.f32.mrb[0].mxu0
        %v453 = vadd.f32 %v404, %v452
        %v454 = vpop.f32.mrb[0].mxu0
        %v455 = vpop.f32.mrb[0].mxu0
        %v456 = vpop.f32.mrb[0].mxu0
        %457 = vdwg.mxu0
        %v458 = vsub.f32 0.0, %v453
        %v459 = vmul.f32 %v458, 1.442695
        %v460 = vpow.pop %v459
        %v461 = vadd.f32 %v460, 1.0
        %v462 = vrcp.pop %v461
        %v463 = vmul.f32 %v390, %v462
        %464 = vst [vmem:[%s318] sm:$0xff] %v463
        %s465 = sand.u32 %s175, 1
        %s466 = scalar_lea.sflag [#allocation4], %s465
        %s467 = sand.u32 %s175, 1
        %s468 = smul.addr %s467, 8
        %s469 = scalar_lea.vmem [#allocation8], %s468
        // Predicated region
        $region53: #{tpu_custom_call.1} parent=39 // pred_check
          %p470 = pneg %p185
        $region54: #{tpu_custom_call.1} parent=39 // pred_check_branch
          %472 = sbr.rel (%p470) target = $region56
        $region55: #{tpu_custom_call.1} parent=39 // pred_region
          %s474 = ssub.s32 128, 128
          %475 = vsyncadd %s466, %s474
          %s476 = sadd.s32 %s27, %s28
          %s477 = smul.addr %s476, 128
          %s478 = scalar_lea.hbm %s5, %s477
          %s480 = sshll.u32 %s469, 4
          %s481 = int_to_ptr.vmem [resolvable:$true] %s480
          %483 = dma.vmem_to_hbm [thread:$0]  %s481, 128, %s478, %s466
        $region56: #{tpu_custom_call.1} parent=39 // pred_fallthru
          _
      $region40: #{tpu_custom_call.1} parent=5 // pred_fallthru
        _
      %p484 = scmp.le.s32.totalorder 2, %s18
      // Predicated region
      $region57: #{tpu_custom_call.1} parent=5 // pred_check
        %p485 = pneg %p484
      $region58: #{tpu_custom_call.1} parent=5 // pred_check_branch
        %487 = sbr.rel (%p485) target = $region60
      $region59: #{tpu_custom_call.1} parent=5 // pred_region
        %s488 = ssub.s32 %s18, 2
        // Predicated region
        $region61: #{tpu_custom_call.1} parent=59 // pred_check
          %p489 = pneg %p191
        $region62: #{tpu_custom_call.1} parent=59 // pred_check_branch
          %491 = sbr.rel (%p489) target = $region64
        $region63: #{tpu_custom_call.1} parent=59 // pred_region
          %s492 = sand.u32 %s176, 1
          %s493 = scalar_lea.sflag [#allocation4], %s492
          %s494 = sand.u32 %s176, 1
          %s495 = smul.addr %s494, 8
          %s496 = scalar_lea.vmem [#allocation8], %s495
          %497 = dma.done %s493, 128
        $region64: #{tpu_custom_call.1} parent=59 // pred_fallthru
          _
      $region60: #{tpu_custom_call.1} parent=5 // pred_fallthru
        _
    $region6: #{tpu_custom_call.1} parent=1 // loop_footer
      %s22 = sadd.s32 1, %s18
    $region7: #{tpu_custom_call.1} parent=1 // loop_footer_branch
      %17 = sbr.rel target = $region3
    $region8: #{tpu_custom_call.1} parent=1 // loop_exit
      _
    %498 = vsyncpa [#allocation3], 1
    %s499 = scalar_lea.sflag [#allocation3], 1
    %500 = vsyncpa %s499, 1
    %501 = vsyncpa [#allocation6], 1
    %502 = vsyncpa [#allocation4], 1
    %s503 = scalar_lea.sflag [#allocation4], 1
    %504 = vsyncpa %s503, 1

</llo_original>
